<compile_context>
chip_gen: v5e
topology: v5e:2x2
jax: 0.10.0
libtpu: 0.0.40
codegen_flags: <defaults>
</compile_context>

<pallas_src>
import math

import numpy as np
import jax
import jax.numpy as jnp
from jax.experimental import pallas as pl
from jax.experimental.pallas import tpu as pltpu


def _upsample2x_matrix(n: int) -> np.ndarray:
    """(2n, n) bilinear 2x upsampling matrix (PyTorch align_corners=False semantics)."""
    m = np.zeros((2 * n, n), dtype=np.float32)
    for o in range(2 * n):
        src = max((o + 0.5) * 0.5 - 0.5, 0.0)
        i0 = min(int(np.floor(src)), n - 1)
        i1 = min(i0 + 1, n - 1)
        lam = src - i0
        m[o, i0] += 1.0 - lam
        m[o, i1] += lam
    return m


def _up2x_kernel(x_ref, uh_ref, uwt_ref, o_ref, t_ref):
    # x_ref:   (nb*H, W)    nb input planes, flattened along sublanes (free reshape in HBM)
    # uh_ref:  (2H, H)      H-direction (row) upsampling weights, compute dtype
    # uwt_ref: (W, 2W)      W-direction (col) upsampling weights (transposed), compute dtype
    # o_ref:   (nb*2H, 2W)  nb output planes, flattened along sublanes
    # t_ref:   (nb*2H, W)   VMEM scratch holding the H-pass result, compute dtype
    H2, H = uh_ref.shape
    nb = x_ref.shape[0] // H
    cdt = t_ref.dtype
    uh = uh_ref[...]

    # Pass 1 (rows, the smaller pass): t_j = U_h @ x_j, one small matmul per plane
    # (M = 2H).  Static Python unroll with *static* slice offsets; each result is stored
    # to VMEM scratch immediately, so only one (2H, W) temporary is live at a time.
    for j in range(nb):
        xj = x_ref[j * H:(j + 1) * H, :].astype(cdt)
        t_ref[j * H2:(j + 1) * H2, :] = jnp.dot(
            uh, xj, preferred_element_type=jnp.float32).astype(cdt)

    # Pass 2 (cols, the larger pass, 2x the FLOPs): one batched lane-dense matmul over all
    # planes of the step: (nb*2H, W) @ (W, 2W), M = nb*2H fills the MXU M dimension.
    o_ref[...] = jnp.dot(t_ref[...], uwt_ref[...],
                         preferred_element_type=jnp.float32).astype(o_ref.dtype)


def _vmem_physical_bytes() -> int:
    """Physical VMEM of the current TPU generation (conservative fallback = v7x 64 MiB)."""
    try:
        info = pltpu.get_tpu_info()
        for attr in ("vmem_capacity_bytes", "vmem_size_bytes"):
            v = getattr(info, attr, None)
            if v:
                return int(v)
    except Exception:
        pass
    return 64 << 20


def _per_plane_step_bytes(h: int, w: int, itemsize: int) -> int:
    # Double-buffered input (H*W) + output (4*H*W) blocks, scratch slab and the f32
    # pass-2 temporary, per plane.
    return 2 * (h * w + 4 * h * w) * itemsize + 2 * h * w * 4 + 4 * h * w * 4


def _pick_planes_per_step(n_planes: int, h: int, w: int, itemsize: int,
                          vmem_budget_bytes: int) -> int:
    """Planes per grid step: VMEM-bounded, sublane-aligned, megacore-friendly."""
    per_plane = _per_plane_step_bytes(h, w, itemsize)
    cap = min(max(1, vmem_budget_bytes // per_plane), n_planes, 16)  # 16 bounds the unroll

    # The flattened input block is (nb*H, W); its sublane dim must be a multiple of 8
    # (or equal the full dim).  `step` is the smallest nb satisfying that.
    step = 8 // math.gcd(h, 8)
    if step > n_planes:
        return n_planes                 # block == full array: always legal
    cap = max(step, (cap // step) * step)

    cands = list(range(step, cap + 1, step))
    divisors = [d for d in cands if n_planes % d == 0]
    if divisors and 2 * max(divisors) > cap:
        nb = max(divisors)              # exact tiling, no ragged tail
    else:
        nb = cap                        # poor divisors: accept a ragged (masked) last block

    # v7x has two TensorCores sharing HBM: prefer an even number of grid steps when that
    # does not shrink the block by more than 2x.
    steps = -(-n_planes // nb)
    if steps > 1 and steps % 2 == 1:
        even = [d for d in cands if 2 * d >= nb and (-(-n_planes // d)) % 2 == 0]
        if even:
            nb = max(even)
    return nb


def bevplane_upsample2x(tpl_xy: jax.Array) -> jax.Array:
    """2x bilinear upsample (align_corners=False) of an NCHW BEV plane."""
    B, C, H, W = tpl_xy.shape
    N = B * C
    itemsize = tpl_xy.dtype.itemsize

    phys_vmem = _vmem_physical_bytes()
    vmem_budget = min(phys_vmem // 3, 40 << 20)
    nb = _pick_planes_per_step(N, H, W, itemsize, vmem_budget)
    num_steps = pl.cdiv(N, nb)

    # Compute dtype: bf16 fast path (weights are bf16-exact), otherwise f32.
    cdt = jnp.bfloat16 if tpl_xy.dtype == jnp.bfloat16 else jnp.float32
    uh = jnp.asarray(_upsample2x_matrix(H), dtype=cdt)        # (2H, H)
    uwt = jnp.asarray(_upsample2x_matrix(W).T, dtype=cdt)     # (W, 2W)

    # Free reshapes: planes flattened along the sublane axis, last (lane) dim untouched.
    x2 = tpl_xy.reshape(N * H, W)

    est_vmem = (nb * _per_plane_step_bytes(H, W, itemsize)
                + (2 * H * H + 2 * W * W) * uh.dtype.itemsize)
    vmem_limit = min(phys_vmem * 3 // 4, max(32 << 20, est_vmem + (8 << 20)))

    flops = 4 * N * H * H * W + 8 * N * H * W * W
    bytes_accessed = 5 * N * H * W * itemsize + (2 * H * H + 2 * W * W) * uh.dtype.itemsize

    out2 = pl.pallas_call(
        _up2x_kernel,
        out_shape=jax.ShapeDtypeStruct((N * 2 * H, 2 * W), tpl_xy.dtype),
        grid_spec=pltpu.PrefetchScalarGridSpec(
            num_scalar_prefetch=0,
            grid=(num_steps,),
            in_specs=[
                pl.BlockSpec((nb * H, W), lambda i: (i, 0)),
                pl.BlockSpec((2 * H, H), lambda i: (0, 0)),
                pl.BlockSpec((W, 2 * W), lambda i: (0, 0)),
            ],
            out_specs=pl.BlockSpec((nb * 2 * H, 2 * W), lambda i: (i, 0)),
            scratch_shapes=[pltpu.VMEM((nb * 2 * H, W), cdt)],
        ),
        compiler_params=pltpu.CompilerParams(
            dimension_semantics=("parallel",),
            vmem_limit_bytes=int(vmem_limit),
        ),
        cost_estimate=pl.CostEstimate(
            flops=flops, transcendentals=0, bytes_accessed=bytes_accessed),
    )(x2, uh, uwt)

    return out2.reshape(B, C, 2 * H, 2 * W)                   # free reshape


def _ref_bilinear_up2x(x: jax.Array) -> jax.Array:
    """Pure-jnp gather-based bilinear 2x reference (exact f32, no matmuls)."""
    B, C, H, W = x.shape

    def coords(n):
        o = np.arange(2 * n)
        src = np.maximum((o + 0.5) * 0.5 - 0.5, 0.0)
        i0 = np.minimum(np.floor(src).astype(np.int32), n - 1)
        i1 = np.minimum(i0 + 1, n - 1)
        lam = (src - i0).astype(np.float32)
        return i0, i1, lam

    i0h, i1h, lh = coords(H)
    i0w, i1w, lw = coords(W)
    xh = (x[:, :, i0h, :] * (1.0 - lh)[None, None, :, None]
          + x[:, :, i1h, :] * lh[None, None, :, None])
    return (xh[:, :, :, i0w] * (1.0 - lw)[None, None, None, :]
            + xh[:, :, :, i1w] * lw[None, None, None, :])


if __name__ == "__main__":
    key = jax.random.PRNGKey(0)
    x = jax.random.normal(key, (2, 4, 16, 16), dtype=jnp.float32)

    y = jax.block_until_ready(bevplane_upsample2x(x))
    B, C, H, W = x.shape
    assert y.shape == (B, C, 2 * H, 2 * W) and y.dtype == x.dtype

    # Check against an exact f32 gather-based bilinear reference.  Tolerances cover the
    # MXU's default f32 matmul handling (operands may be rounded to bf16 inside the MXU,
    # giving ~1e-3 relative error); with exact arithmetic the error is ~1e-6.
    y_ref = _ref_bilinear_up2x(x)
    err_max = float(jnp.max(jnp.abs(y - y_ref)))
    err_mean = float(jnp.mean(jnp.abs(y - y_ref)))
    assert err_max < 1e-1, f"max abs err vs gather reference: {err_max}"
    assert err_mean < 1e-2, f"mean abs err vs gather reference: {err_mean}"

    # Loose cross-check against jax.image.resize (independent bilinear align_corners=False).
    y_xla = jax.image.resize(x, (B, C, 2 * H, 2 * W), method="bilinear")
    err2 = float(jnp.max(jnp.abs(y - y_xla)))
    assert err2 < 1e-1, f"max abs err vs jax.image.resize: {err2}"

    # bf16 fast path.
    xb = x.astype(jnp.bfloat16)
    yb = jax.block_until_ready(bevplane_upsample2x(xb))
    assert yb.shape == (B, C, 2 * H, 2 * W) and yb.dtype == jnp.bfloat16
    yb_ref = _ref_bilinear_up2x(xb.astype(jnp.float32))
    errb = float(jnp.max(jnp.abs(yb.astype(jnp.float32) - yb_ref)))
    assert errb < 1e-1, f"max abs err (bf16 path) vs gather reference: {errb}"

    print("KERNEL_OK")
</pallas_src>

<mosaic_0001>
module attributes {stable_mosaic.version = 11 : i64} {
  func.func @_up2x_kernel(%arg0: i32, %arg1: memref<128x16xf32, #tpu.memory_space<vmem>>, %arg2: memref<32x16xf32, #tpu.memory_space<vmem>>, %arg3: memref<16x32xf32, #tpu.memory_space<vmem>>, %arg4: memref<256x32xf32, #tpu.memory_space<vmem>>, %arg5: memref<256x16xf32, #tpu.memory_space<vmem>>) attributes {dimension_semantics = [#tpu.dimension_semantics<parallel>], iteration_bounds = array<i64: 1>, scalar_prefetch = 0 : i64, scratch_operands = 1 : i64, tpu.core_type = #tpu.core_type<tc>, window_params = [{transform_indices = @transform_0, window_bounds = array<i64: 128, 16>}, {pipeline_mode = #tpu.pipeline_mode<synchronous>, transform_indices = @transform_1, window_bounds = array<i64: 32, 16>}, {pipeline_mode = #tpu.pipeline_mode<synchronous>, transform_indices = @transform_2, window_bounds = array<i64: 16, 32>}, {transform_indices = @transform_3, window_bounds = array<i64: 256, 32>}]} {
    %c0 = arith.constant 0 : index
    %c0_0 = arith.constant 0 : index
    %0 = vector.load %arg2[%c0, %c0_0] : memref<32x16xf32, #tpu.memory_space<vmem>>, vector<32x16xf32>
    %c0_1 = arith.constant 0 : index
    %c0_2 = arith.constant 0 : index
    %1 = vector.load %arg1[%c0_1, %c0_2] : memref<128x16xf32, #tpu.memory_space<vmem>>, vector<16x16xf32>
    %cst = arith.constant dense<0.000000e+00> : vector<32x16xf32>
    %2 = tpu.matmul %0, %1, %cst {dimension_numbers = #tpu.dot_dimension_numbers<[1], [0], [0], [1], [0, 0, 1, 1], [], []>} : vector<32x16xf32>, vector<16x16xf32>, vector<32x16xf32> -> vector<32x16xf32>
    %c0_3 = arith.constant 0 : index
    %c0_4 = arith.constant 0 : index
    %3 = vector.load %arg5[%c0_3, %c0_4] : memref<256x16xf32, #tpu.memory_space<vmem>>, vector<32x16xf32>
    tpu.vector_store %arg5[%c0_3, %c0_4], %2 {strides = array<i32>} : memref<256x16xf32, #tpu.memory_space<vmem>>, vector<32x16xf32>,
    %c16 = arith.constant 16 : index
    %c0_5 = arith.constant 0 : index
    %4 = vector.load %arg1[%c16, %c0_5] : memref<128x16xf32, #tpu.memory_space<vmem>>, vector<16x16xf32>
    %cst_6 = arith.constant dense<0.000000e+00> : vector<32x16xf32>
    %5 = tpu.matmul %0, %4, %cst_6 {dimension_numbers = #tpu.dot_dimension_numbers<[1], [0], [0], [1], [0, 0, 1, 1], [], []>} : vector<32x16xf32>, vector<16x16xf32>, vector<32x16xf32> -> vector<32x16xf32>
    %c32 = arith.constant 32 : index
    %c0_7 = arith.constant 0 : index
    %6 = vector.load %arg5[%c32, %c0_7] : memref<256x16xf32, #tpu.memory_space<vmem>>, vector<32x16xf32>
    tpu.vector_store %arg5[%c32, %c0_7], %5 {strides = array<i32>} : memref<256x16xf32, #tpu.memory_space<vmem>>, vector<32x16xf32>,
    %c32_8 = arith.constant 32 : index
    %c0_9 = arith.constant 0 : index
    %7 = vector.load %arg1[%c32_8, %c0_9] : memref<128x16xf32, #tpu.memory_space<vmem>>, vector<16x16xf32>
    %cst_10 = arith.constant dense<0.000000e+00> : vector<32x16xf32>
    %8 = tpu.matmul %0, %7, %cst_10 {dimension_numbers = #tpu.dot_dimension_numbers<[1], [0], [0], [1], [0, 0, 1, 1], [], []>} : vector<32x16xf32>, vector<16x16xf32>, vector<32x16xf32> -> vector<32x16xf32>
    %c64 = arith.constant 64 : index
    %c0_11 = arith.constant 0 : index
    %9 = vector.load %arg5[%c64, %c0_11] : memref<256x16xf32, #tpu.memory_space<vmem>>, vector<32x16xf32>
    tpu.vector_store %arg5[%c64, %c0_11], %8 {strides = array<i32>} : memref<256x16xf32, #tpu.memory_space<vmem>>, vector<32x16xf32>,
    %c48 = arith.constant 48 : index
    %c0_12 = arith.constant 0 : index
    %10 = vector.load %arg1[%c48, %c0_12] : memref<128x16xf32, #tpu.memory_space<vmem>>, vector<16x16xf32>
    %cst_13 = arith.constant dense<0.000000e+00> : vector<32x16xf32>
    %11 = tpu.matmul %0, %10, %cst_13 {dimension_numbers = #tpu.dot_dimension_numbers<[1], [0], [0], [1], [0, 0, 1, 1], [], []>} : vector<32x16xf32>, vector<16x16xf32>, vector<32x16xf32> -> vector<32x16xf32>
    %c96 = arith.constant 96 : index
    %c0_14 = arith.constant 0 : index
    %12 = vector.load %arg5[%c96, %c0_14] : memref<256x16xf32, #tpu.memory_space<vmem>>, vector<32x16xf32>
    tpu.vector_store %arg5[%c96, %c0_14], %11 {strides = array<i32>} : memref<256x16xf32, #tpu.memory_space<vmem>>, vector<32x16xf32>,
    %c64_15 = arith.constant 64 : index
    %c0_16 = arith.constant 0 : index
    %13 = vector.load %arg1[%c64_15, %c0_16] : memref<128x16xf32, #tpu.memory_space<vmem>>, vector<16x16xf32>
    %cst_17 = arith.constant dense<0.000000e+00> : vector<32x16xf32>
    %14 = tpu.matmul %0, %13, %cst_17 {dimension_numbers = #tpu.dot_dimension_numbers<[1], [0], [0], [1], [0, 0, 1, 1], [], []>} : vector<32x16xf32>, vector<16x16xf32>, vector<32x16xf32> -> vector<32x16xf32>
    %c128 = arith.constant 128 : index
    %c0_18 = arith.constant 0 : index
    %15 = vector.load %arg5[%c128, %c0_18] : memref<256x16xf32, #tpu.memory_space<vmem>>, vector<32x16xf32>
    tpu.vector_store %arg5[%c128, %c0_18], %14 {strides = array<i32>} : memref<256x16xf32, #tpu.memory_space<vmem>>, vector<32x16xf32>,
    %c80 = arith.constant 80 : index
    %c0_19 = arith.constant 0 : index
    %16 = vector.load %arg1[%c80, %c0_19] : memref<128x16xf32, #tpu.memory_space<vmem>>, vector<16x16xf32>
    %cst_20 = arith.constant dense<0.000000e+00> : vector<32x16xf32>
    %17 = tpu.matmul %0, %16, %cst_20 {dimension_numbers = #tpu.dot_dimension_numbers<[1], [0], [0], [1], [0, 0, 1, 1], [], []>} : vector<32x16xf32>, vector<16x16xf32>, vector<32x16xf32> -> vector<32x16xf32>
    %c160 = arith.constant 160 : index
    %c0_21 = arith.constant 0 : index
    %18 = vector.load %arg5[%c160, %c0_21] : memref<256x16xf32, #tpu.memory_space<vmem>>, vector<32x16xf32>
    tpu.vector_store %arg5[%c160, %c0_21], %17 {strides = array<i32>} : memref<256x16xf32, #tpu.memory_space<vmem>>, vector<32x16xf32>,
    %c96_22 = arith.constant 96 : index
    %c0_23 = arith.constant 0 : index
    %19 = vector.load %arg1[%c96_22, %c0_23] : memref<128x16xf32, #tpu.memory_space<vmem>>, vector<16x16xf32>
    %cst_24 = arith.constant dense<0.000000e+00> : vector<32x16xf32>
    %20 = tpu.matmul %0, %19, %cst_24 {dimension_numbers = #tpu.dot_dimension_numbers<[1], [0], [0], [1], [0, 0, 1, 1], [], []>} : vector<32x16xf32>, vector<16x16xf32>, vector<32x16xf32> -> vector<32x16xf32>
    %c192 = arith.constant 192 : index
    %c0_25 = arith.constant 0 : index
    %21 = vector.load %arg5[%c192, %c0_25] : memref<256x16xf32, #tpu.memory_space<vmem>>, vector<32x16xf32>
    tpu.vector_store %arg5[%c192, %c0_25], %20 {strides = array<i32>} : memref<256x16xf32, #tpu.memory_space<vmem>>, vector<32x16xf32>,
    %c112 = arith.constant 112 : index
    %c0_26 = arith.constant 0 : index
    %22 = vector.load %arg1[%c112, %c0_26] : memref<128x16xf32, #tpu.memory_space<vmem>>, vector<16x16xf32>
    %cst_27 = arith.constant dense<0.000000e+00> : vector<32x16xf32>
    %23 = tpu.matmul %0, %22, %cst_27 {dimension_numbers = #tpu.dot_dimension_numbers<[1], [0], [0], [1], [0, 0, 1, 1], [], []>} : vector<32x16xf32>, vector<16x16xf32>, vector<32x16xf32> -> vector<32x16xf32>
    %c224 = arith.constant 224 : index
    %c0_28 = arith.constant 0 : index
    %24 = vector.load %arg5[%c224, %c0_28] : memref<256x16xf32, #tpu.memory_space<vmem>>, vector<32x16xf32>
    tpu.vector_store %arg5[%c224, %c0_28], %23 {strides = array<i32>} : memref<256x16xf32, #tpu.memory_space<vmem>>, vector<32x16xf32>,
    %c0_29 = arith.constant 0 : index
    %c0_30 = arith.constant 0 : index
    %25 = vector.load %arg5[%c0_29, %c0_30] : memref<256x16xf32, #tpu.memory_space<vmem>>, vector<256x16xf32>
    %c0_31 = arith.constant 0 : index
    %c0_32 = arith.constant 0 : index
    %26 = vector.load %arg3[%c0_31, %c0_32] : memref<16x32xf32, #tpu.memory_space<vmem>>, vector<16x32xf32>
    %cst_33 = arith.constant dense<0.000000e+00> : vector<256x32xf32>
    %27 = tpu.matmul %25, %26, %cst_33 {dimension_numbers = #tpu.dot_dimension_numbers<[1], [0], [0], [1], [0, 0, 1, 1], [], []>} : vector<256x16xf32>, vector<16x32xf32>, vector<256x32xf32> -> vector<256x32xf32>
    %c0_34 = arith.constant 0 : index
    %c0_35 = arith.constant 0 : index
    %28 = vector.load %arg4[%c0_34, %c0_35] : memref<256x32xf32, #tpu.memory_space<vmem>>, vector<256x32xf32>
    tpu.vector_store %arg4[%c0_34, %c0_35], %27 {strides = array<i32>} : memref<256x32xf32, #tpu.memory_space<vmem>>, vector<256x32xf32>,
    return
  }
  func.func @transform_0(%arg0: i32) -> (i32, i32) {
    %c0_i32 = arith.constant 0 : i32
    %c0_i32_0 = arith.constant 0 : i32
    return %arg0, %c0_i32 : i32, i32
  }
  func.func @transform_1(%arg0: i32) -> (i32, i32) {
    %c0_i32 = arith.constant 0 : i32
    %c0_i32_0 = arith.constant 0 : i32
    %c0_i32_1 = arith.constant 0 : i32
    return %c0_i32, %c0_i32_0 : i32, i32
  }
  func.func @transform_2(%arg0: i32) -> (i32, i32) {
    %c0_i32 = arith.constant 0 : i32
    %c0_i32_0 = arith.constant 0 : i32
    %c0_i32_1 = arith.constant 0 : i32
    return %c0_i32, %c0_i32_0 : i32, i32
  }
  func.func @transform_3(%arg0: i32) -> (i32, i32) {
    %c0_i32 = arith.constant 0 : i32
    %c0_i32_0 = arith.constant 0 : i32
    return %arg0, %c0_i32 : i32, i32
  }
}

</mosaic_0001>

<llo_original>
// kernel: tpu_custom_call.1
$region0: #{tpu_custom_call.1}
  #allocation0 [shape = 'u32[]', space=smem, size = 0x4, offset = 0x4, fixed_abs, tag = 'smem constant byte address 0x4 - core index']
  #allocation1 [shape = 'u32[72,128]{1,0:T(1,128)}', space=vmem, size = 0x9000, scoped, tag = 'internal scratch']
  #allocation2 [shape = 'f32[256,16]{1,0:T(8,128)}', space=vmem, size = 0x20000, scoped, tag = 'scratch operand']
  %s0 = inlined_call_operand.vmem [shape: f32[128,16], index: 0, kind: input, shape index: {}]
  %s1 = inlined_call_operand.vmem [shape: f32[32,16], index: 1, kind: input, shape index: {}]
  %s2 = inlined_call_operand.vmem [shape: f32[16,32], index: 2, kind: input, shape index: {}]
  %s3 = inlined_call_operand.vmem [shape: f32[256,32], index: 3, kind: output, shape index: {}]
  %s4 = sld [smem:[#allocation0]]
  $region22: #{tpu_custom_call.1} parent=0
    _
  %s6 = ssub.s32 1, %s4
  %s7 = scalar_select 0, %s6, %s4
  // Predicated region
  $region2: #{tpu_custom_call.1} parent=0 // pred_check
    _
  $region3: #{tpu_custom_call.1} parent=0 // pred_check_branch
    %9 = sbr.rel (0) target = $region5
  $region4: #{tpu_custom_call.1} parent=0 // pred_region
    _
  $region5: #{tpu_custom_call.1} parent=0 // pred_fallthru
    _
  // Predicated region
  $region6: #{tpu_custom_call.1} parent=0 // pred_check
    _
  $region7: #{tpu_custom_call.1} parent=0 // pred_check_branch
    %11 = sbr.rel (0) target = $region9
  $region8: #{tpu_custom_call.1} parent=0 // pred_region
    _
  $region9: #{tpu_custom_call.1} parent=0 // pred_fallthru
    _
  // Predicated region
  $region10: #{tpu_custom_call.1} parent=0 // pred_check
    _
  $region11: #{tpu_custom_call.1} parent=0 // pred_check_branch
    %13 = sbr.rel (0) target = $region13
  $region12: #{tpu_custom_call.1} parent=0 // pred_region
    _
  $region13: #{tpu_custom_call.1} parent=0 // pred_fallthru
    _
  %v14 = vld [vmem:[%s1] sm:$0xff]
  %v15 = vld [vmem:[%s1 + $0x8] sm:$0xff]
  %v16 = vld [vmem:[%s1 + $0x10] sm:$0xff]
  %v17 = vld [vmem:[%s1 + $0x18] sm:$0xff]
  %v18 = vld [vmem:[%s0] sm:$0xff]
  %v19 = vld [vmem:[%s0 + $0x8] sm:$0xff]
  %vm20 = vcmask 130048
  %v22 = vsel %vm20, %v14, 0
  %v25 = vsel %vm20, %v15, 0
  %v28 = vsel %vm20, %v16, 0
  %v31 = vsel %vm20, %v17, 0
  %33 = vmatpush.msra.mxu0 0.0
  %34 = vmatpush.msra.mxu0 0.0
  %35 = vmatpush.msra.mxu0 0.0
  %36 = vmatpush.msra.mxu0 0.0
  %37 = vmatpush.msra.mxu0 0.0
  %38 = vmatpush.msra.mxu0 0.0
  %39 = vmatpush.msra.mxu0 0.0
  %40 = vmatpush.msra.mxu0 0.0
  %41 = vmatpush.msra.mxu0 0.0
  %42 = vmatpush.msra.mxu0 0.0
  %43 = vmatpush.msra.mxu0 0.0
  %44 = vmatpush.msra.mxu0 0.0
  %45 = vmatpush.msra.mxu0 0.0
  %46 = vmatpush.msra.mxu0 0.0
  %47 = vmatpush.msra.mxu0 %v19
  %48 = vmatpush.msra.mxu0 %v18
  %49 = vmatmul.f32.gmra.mxu0 %v22
  %v50 = vpop.f32.mrf.mxu0
  %v51 = vadd.f32 0.0, %v50
  %52 = vmatmul.f32.gmra.mxu0 %v25
  %v53 = vpop.f32.mrf.mxu0
  %v54 = vadd.f32 0.0, %v53
  %55 = vmatmul.f32.gmra.mxu0 %v28
  %v56 = vpop.f32.mrf.mxu0
  %v57 = vadd.f32 0.0, %v56
  %58 = vmatmul.f32.gmra.mxu0 %v31
  %v59 = vpop.f32.mrf.mxu0
  %v60 = vadd.f32 0.0, %v59
  %61 = vdwg.mxu0
  %62 = vst.msk [vmem:[#allocation2] sm:$0xff] %vm20, %v51
  %63 = vst.msk [vmem:[#allocation2 + $0x8] sm:$0xff] %vm20, %v54
  %64 = vst.msk [vmem:[#allocation2 + $0x10] sm:$0xff] %vm20, %v57
  %65 = vst.msk [vmem:[#allocation2 + $0x18] sm:$0xff] %vm20, %v60
  %v66 = vld [vmem:[%s0 + $0x10] sm:$0xff]
  %v67 = vld [vmem:[%s0 + $0x18] sm:$0xff]
  %68 = vmatpush.msra.mxu0 0.0
  %69 = vmatpush.msra.mxu0 0.0
  %70 = vmatpush.msra.mxu0 0.0
  %71 = vmatpush.msra.mxu0 0.0
  %72 = vmatpush.msra.mxu0 0.0
  %73 = vmatpush.msra.mxu0 0.0
  %74 = vmatpush.msra.mxu0 0.0
  %75 = vmatpush.msra.mxu0 0.0
  %76 = vmatpush.msra.mxu0 0.0
  %77 = vmatpush.msra.mxu0 0.0
  %78 = vmatpush.msra.mxu0 0.0
  %79 = vmatpush.msra.mxu0 0.0
  %80 = vmatpush.msra.mxu0 0.0
  %81 = vmatpush.msra.mxu0 0.0
  %82 = vmatpush.msra.mxu0 %v67
  %83 = vmatpush.msra.mxu0 %v66
  %84 = vmatmul.f32.gmra.mxu0 %v22
  %v85 = vpop.f32.mrf.mxu0
  %v86 = vadd.f32 0.0, %v85
  %87 = vmatmul.f32.gmra.mxu0 %v25
  %v88 = vpop.f32.mrf.mxu0
  %v89 = vadd.f32 0.0, %v88
  %90 = vmatmul.f32.gmra.mxu0 %v28
  %v91 = vpop.f32.mrf.mxu0
  %v92 = vadd.f32 0.0, %v91
  %93 = vmatmul.f32.gmra.mxu0 %v31
  %v94 = vpop.f32.mrf.mxu0
  %v95 = vadd.f32 0.0, %v94
  %96 = vdwg.mxu0
  %97 = vst.msk [vmem:[#allocation2 + $0x20] sm:$0xff] %vm20, %v86
  %98 = vst.msk [vmem:[#allocation2 + $0x28] sm:$0xff] %vm20, %v89
  %99 = vst.msk [vmem:[#allocation2 + $0x30] sm:$0xff] %vm20, %v92
  %100 = vst.msk [vmem:[#allocation2 + $0x38] sm:$0xff] %vm20, %v95
  %v101 = vld [vmem:[%s0 + $0x20] sm:$0xff]
  %v102 = vld [vmem:[%s0 + $0x28] sm:$0xff]
  %103 = vmatpush.msra.mxu0 0.0
  %104 = vmatpush.msra.mxu0 0.0
  %105 = vmatpush.msra.mxu0 0.0
  %106 = vmatpush.msra.mxu0 0.0
  %107 = vmatpush.msra.mxu0 0.0
  %108 = vmatpush.msra.mxu0 0.0
  %109 = vmatpush.msra.mxu0 0.0
  %110 = vmatpush.msra.mxu0 0.0
  %111 = vmatpush.msra.mxu0 0.0
  %112 = vmatpush.msra.mxu0 0.0
  %113 = vmatpush.msra.mxu0 0.0
  %114 = vmatpush.msra.mxu0 0.0
  %115 = vmatpush.msra.mxu0 0.0
  %116 = vmatpush.msra.mxu0 0.0
  %117 = vmatpush.msra.mxu0 %v102
  %118 = vmatpush.msra.mxu0 %v101
  %119 = vmatmul.f32.gmra.mxu0 %v22
  %v120 = vpop.f32.mrf.mxu0
  %v121 = vadd.f32 0.0, %v120
  %122 = vmatmul.f32.gmra.mxu0 %v25
  %v123 = vpop.f32.mrf.mxu0
  %v124 = vadd.f32 0.0, %v123
  %125 = vmatmul.f32.gmra.mxu0 %v28
  %v126 = vpop.f32.mrf.mxu0
  %v127 = vadd.f32 0.0, %v126
  %128 = vmatmul.f32.gmra.mxu0 %v31
  %v129 = vpop.f32.mrf.mxu0
  %v130 = vadd.f32 0.0, %v129
  %131 = vdwg.mxu0
  %132 = vst.msk [vmem:[#allocation2 + $0x40] sm:$0xff] %vm20, %v121
  %133 = vst.msk [vmem:[#allocation2 + $0x48] sm:$0xff] %vm20, %v124
  %134 = vst.msk [vmem:[#allocation2 + $0x50] sm:$0xff] %vm20, %v127
  %135 = vst.msk [vmem:[#allocation2 + $0x58] sm:$0xff] %vm20, %v130
  %v136 = vld [vmem:[%s0 + $0x30] sm:$0xff]
  %v137 = vld [vmem:[%s0 + $0x38] sm:$0xff]
  %138 = vmatpush.msra.mxu0 0.0
  %139 = vmatpush.msra.mxu0 0.0
  %140 = vmatpush.msra.mxu0 0.0
  %141 = vmatpush.msra.mxu0 0.0
  %142 = vmatpush.msra.mxu0 0.0
  %143 = vmatpush.msra.mxu0 0.0
  %144 = vmatpush.msra.mxu0 0.0
  %145 = vmatpush.msra.mxu0 0.0
  %146 = vmatpush.msra.mxu0 0.0
  %147 = vmatpush.msra.mxu0 0.0
  %148 = vmatpush.msra.mxu0 0.0
  %149 = vmatpush.msra.mxu0 0.0
  %150 = vmatpush.msra.mxu0 0.0
  %151 = vmatpush.msra.mxu0 0.0
  %152 = vmatpush.msra.mxu0 %v137
  %153 = vmatpush.msra.mxu0 %v136
  %154 = vmatmul.f32.gmra.mxu0 %v22
  %v155 = vpop.f32.mrf.mxu0
  %v156 = vadd.f32 0.0, %v155
  %157 = vmatmul.f32.gmra.mxu0 %v25
  %v158 = vpop.f32.mrf.mxu0
  %v159 = vadd.f32 0.0, %v158
  %160 = vmatmul.f32.gmra.mxu0 %v28
  %v161 = vpop.f32.mrf.mxu0
  %v162 = vadd.f32 0.0, %v161
  %163 = vmatmul.f32.gmra.mxu0 %v31
  %v164 = vpop.f32.mrf.mxu0
  %v165 = vadd.f32 0.0, %v164
  %166 = vdwg.mxu0
  %167 = vst.msk [vmem:[#allocation2 + $0x60] sm:$0xff] %vm20, %v156
  %168 = vst.msk [vmem:[#allocation2 + $0x68] sm:$0xff] %vm20, %v159
  %169 = vst.msk [vmem:[#allocation2 + $0x70] sm:$0xff] %vm20, %v162
  %170 = vst.msk [vmem:[#allocation2 + $0x78] sm:$0xff] %vm20, %v165
  %v171 = vld [vmem:[%s0 + $0x40] sm:$0xff]
  %v172 = vld [vmem:[%s0 + $0x48] sm:$0xff]
  %173 = vmatpush.msra.mxu0 0.0
  %174 = vmatpush.msra.mxu0 0.0
  %175 = vmatpush.msra.mxu0 0.0
  %176 = vmatpush.msra.mxu0 0.0
  %177 = vmatpush.msra.mxu0 0.0
  %178 = vmatpush.msra.mxu0 0.0
  %179 = vmatpush.msra.mxu0 0.0
  %180 = vmatpush.msra.mxu0 0.0
  %181 = vmatpush.msra.mxu0 0.0
  %182 = vmatpush.msra.mxu0 0.0
  %183 = vmatpush.msra.mxu0 0.0
  %184 = vmatpush.msra.mxu0 0.0
  %185 = vmatpush.msra.mxu0 0.0
  %186 = vmatpush.msra.mxu0 0.0
  %187 = vmatpush.msra.mxu0 %v172
  %188 = vmatpush.msra.mxu0 %v171
  %189 = vmatmul.f32.gmra.mxu0 %v22
  %v190 = vpop.f32.mrf.mxu0
  %v191 = vadd.f32 0.0, %v190
  %192 = vmatmul.f32.gmra.mxu0 %v25
  %v193 = vpop.f32.mrf.mxu0
  %v194 = vadd.f32 0.0, %v193
  %195 = vmatmul.f32.gmra.mxu0 %v28
  %v196 = vpop.f32.mrf.mxu0
  %v197 = vadd.f32 0.0, %v196
  %198 = vmatmul.f32.gmra.mxu0 %v31
  %v199 = vpop.f32.mrf.mxu0
  %v200 = vadd.f32 0.0, %v199
  %201 = vdwg.mxu0
  %202 = vst.msk [vmem:[#allocation2 + $0x80] sm:$0xff] %vm20, %v191
  %203 = vst.msk [vmem:[#allocation2 + $0x88] sm:$0xff] %vm20, %v194
  %204 = vst.msk [vmem:[#allocation2 + $0x90] sm:$0xff] %vm20, %v197
  %205 = vst.msk [vmem:[#allocation2 + $0x98] sm:$0xff] %vm20, %v200
  %v206 = vld [vmem:[%s0 + $0x50] sm:$0xff]
  %v207 = vld [vmem:[%s0 + $0x58] sm:$0xff]
  %208 = vmatpush.msra.mxu0 0.0
  %209 = vmatpush.msra.mxu0 0.0
  %210 = vmatpush.msra.mxu0 0.0
  %211 = vmatpush.msra.mxu0 0.0
  %212 = vmatpush.msra.mxu0 0.0
  %213 = vmatpush.msra.mxu0 0.0
  %214 = vmatpush.msra.mxu0 0.0
  %215 = vmatpush.msra.mxu0 0.0
  %216 = vmatpush.msra.mxu0 0.0
  %217 = vmatpush.msra.mxu0 0.0
  %218 = vmatpush.msra.mxu0 0.0
  %219 = vmatpush.msra.mxu0 0.0
  %220 = vmatpush.msra.mxu0 0.0
  %221 = vmatpush.msra.mxu0 0.0
  %222 = vmatpush.msra.mxu0 %v207
  %223 = vmatpush.msra.mxu0 %v206
  %224 = vmatmul.f32.gmra.mxu0 %v22
  %v225 = vpop.f32.mrf.mxu0
  %v226 = vadd.f32 0.0, %v225
  %227 = vmatmul.f32.gmra.mxu0 %v25
  %v228 = vpop.f32.mrf.mxu0
  %v229 = vadd.f32 0.0, %v228
  %230 = vmatmul.f32.gmra.mxu0 %v28
  %v231 = vpop.f32.mrf.mxu0
  %v232 = vadd.f32 0.0, %v231
  %233 = vmatmul.f32.gmra.mxu0 %v31
  %v234 = vpop.f32.mrf.mxu0
  %v235 = vadd.f32 0.0, %v234
  %236 = vdwg.mxu0
  %237 = vst.msk [vmem:[#allocation2 + $0xa0] sm:$0xff] %vm20, %v226
  %238 = vst.msk [vmem:[#allocation2 + $0xa8] sm:$0xff] %vm20, %v229
  %239 = vst.msk [vmem:[#allocation2 + $0xb0] sm:$0xff] %vm20, %v232
  %240 = vst.msk [vmem:[#allocation2 + $0xb8] sm:$0xff] %vm20, %v235
  %v241 = vld [vmem:[%s0 + $0x60] sm:$0xff]
  %v242 = vld [vmem:[%s0 + $0x68] sm:$0xff]
  %243 = vmatpush.msra.mxu0 0.0
  %244 = vmatpush.msra.mxu0 0.0
  %245 = vmatpush.msra.mxu0 0.0
  %246 = vmatpush.msra.mxu0 0.0
  %247 = vmatpush.msra.mxu0 0.0
  %248 = vmatpush.msra.mxu0 0.0
  %249 = vmatpush.msra.mxu0 0.0
  %250 = vmatpush.msra.mxu0 0.0
  %251 = vmatpush.msra.mxu0 0.0
  %252 = vmatpush.msra.mxu0 0.0
  %253 = vmatpush.msra.mxu0 0.0
  %254 = vmatpush.msra.mxu0 0.0
  %255 = vmatpush.msra.mxu0 0.0
  %256 = vmatpush.msra.mxu0 0.0
  %257 = vmatpush.msra.mxu0 %v242
  %258 = vmatpush.msra.mxu0 %v241
  %259 = vmatmul.f32.gmra.mxu0 %v22
  %v260 = vpop.f32.mrf.mxu0
  %v261 = vadd.f32 0.0, %v260
  %262 = vmatmul.f32.gmra.mxu0 %v25
  %v263 = vpop.f32.mrf.mxu0
  %v264 = vadd.f32 0.0, %v263
  %265 = vmatmul.f32.gmra.mxu0 %v28
  %v266 = vpop.f32.mrf.mxu0
  %v267 = vadd.f32 0.0, %v266
  %268 = vmatmul.f32.gmra.mxu0 %v31
  %v269 = vpop.f32.mrf.mxu0
  %v270 = vadd.f32 0.0, %v269
  %271 = vdwg.mxu0
  %272 = vst.msk [vmem:[#allocation2 + $0xc0] sm:$0xff] %vm20, %v261
  %273 = vst.msk [vmem:[#allocation2 + $0xc8] sm:$0xff] %vm20, %v264
  %274 = vst.msk [vmem:[#allocation2 + $0xd0] sm:$0xff] %vm20, %v267
  %275 = vst.msk [vmem:[#allocation2 + $0xd8] sm:$0xff] %vm20, %v270
  %v276 = vld [vmem:[%s0 + $0x70] sm:$0xff]
  %v277 = vld [vmem:[%s0 + $0x78] sm:$0xff]
  %278 = vmatpush.msra.mxu0 0.0
  %279 = vmatpush.msra.mxu0 0.0
  %280 = vmatpush.msra.mxu0 0.0
  %281 = vmatpush.msra.mxu0 0.0
  %282 = vmatpush.msra.mxu0 0.0
  %283 = vmatpush.msra.mxu0 0.0
  %284 = vmatpush.msra.mxu0 0.0
  %285 = vmatpush.msra.mxu0 0.0
  %286 = vmatpush.msra.mxu0 0.0
  %287 = vmatpush.msra.mxu0 0.0
  %288 = vmatpush.msra.mxu0 0.0
  %289 = vmatpush.msra.mxu0 0.0
  %290 = vmatpush.msra.mxu0 0.0
  %291 = vmatpush.msra.mxu0 0.0
  %292 = vmatpush.msra.mxu0 %v277
  %293 = vmatpush.msra.mxu0 %v276
  %294 = vmatmul.f32.gmra.mxu0 %v22
  %v295 = vpop.f32.mrf.mxu0
  %v296 = vadd.f32 0.0, %v295
  %297 = vmatmul.f32.gmra.mxu0 %v25
  %v298 = vpop.f32.mrf.mxu0
  %v299 = vadd.f32 0.0, %v298
  %300 = vmatmul.f32.gmra.mxu0 %v28
  %v301 = vpop.f32.mrf.mxu0
  %v302 = vadd.f32 0.0, %v301
  %303 = vmatmul.f32.gmra.mxu0 %v31
  %v304 = vpop.f32.mrf.mxu0
  %v305 = vadd.f32 0.0, %v304
  %306 = vdwg.mxu0
  %307 = vst.msk [vmem:[#allocation2 + $0xe0] sm:$0xff] %vm20, %v296
  %308 = vst.msk [vmem:[#allocation2 + $0xe8] sm:$0xff] %vm20, %v299
  %309 = vst.msk [vmem:[#allocation2 + $0xf0] sm:$0xff] %vm20, %v302
  %310 = vst.msk [vmem:[#allocation2 + $0xf8] sm:$0xff] %vm20, %v305
  %v311 = vld [vmem:[#allocation2] sm:$0xff]
  %v312 = vld [vmem:[#allocation2 + $0x8] sm:$0xff]
  %v313 = vld [vmem:[#allocation2 + $0x10] sm:$0xff]
  %v314 = vld [vmem:[#allocation2 + $0x18] sm:$0xff]
  %v315 = vld [vmem:[#allocation2 + $0x20] sm:$0xff]
  %v316 = vld [vmem:[#allocation2 + $0x28] sm:$0xff]
  %v317 = vld [vmem:[#allocation2 + $0x30] sm:$0xff]
  %v318 = vld [vmem:[#allocation2 + $0x38] sm:$0xff]
  %v319 = vld [vmem:[#allocation2 + $0x40] sm:$0xff]
  %v320 = vld [vmem:[#allocation2 + $0x48] sm:$0xff]
  %v321 = vld [vmem:[#allocation2 + $0x50] sm:$0xff]
  %v322 = vld [vmem:[#allocation2 + $0x58] sm:$0xff]
  %v323 = vld [vmem:[#allocation2 + $0x60] sm:$0xff]
  %v324 = vld [vmem:[#allocation2 + $0x68] sm:$0xff]
  %v325 = vld [vmem:[#allocation2 + $0x70] sm:$0xff]
  %v326 = vld [vmem:[#allocation2 + $0x78] sm:$0xff]
  %v327 = vld [vmem:[#allocation2 + $0x80] sm:$0xff]
  %v328 = vld [vmem:[#allocation2 + $0x88] sm:$0xff]
  %v329 = vld [vmem:[#allocation2 + $0x90] sm:$0xff]
  %v330 = vld [vmem:[#allocation2 + $0x98] sm:$0xff]
  %v331 = vld [vmem:[#allocation2 + $0xa0] sm:$0xff]
  %v332 = vld [vmem:[#allocation2 + $0xa8] sm:$0xff]
  %v333 = vld [vmem:[#allocation2 + $0xb0] sm:$0xff]
  %v334 = vld [vmem:[#allocation2 + $0xb8] sm:$0xff]
  %v335 = vld [vmem:[#allocation2 + $0xc0] sm:$0xff]
  %v336 = vld [vmem:[#allocation2 + $0xc8] sm:$0xff]
  %v337 = vld [vmem:[#allocation2 + $0xd0] sm:$0xff]
  %v338 = vld [vmem:[#allocation2 + $0xd8] sm:$0xff]
  %v339 = vld [vmem:[#allocation2 + $0xe0] sm:$0xff]
  %v340 = vld [vmem:[#allocation2 + $0xe8] sm:$0xff]
  %v341 = vld [vmem:[#allocation2 + $0xf0] sm:$0xff]
  %v342 = vld [vmem:[#allocation2 + $0xf8] sm:$0xff]
  %v343 = vld [vmem:[%s2] sm:$0xff]
  %v344 = vld [vmem:[%s2 + $0x8] sm:$0xff]
  %v346 = vsel %vm20, %v311, 0
  %v349 = vsel %vm20, %v312, 0
  %v352 = vsel %vm20, %v313, 0
  %v355 = vsel %vm20, %v314, 0
  %v358 = vsel %vm20, %v315, 0
  %v361 = vsel %vm20, %v316, 0
  %v364 = vsel %vm20, %v317, 0
  %v367 = vsel %vm20, %v318, 0
  %v370 = vsel %vm20, %v319, 0
  %v373 = vsel %vm20, %v320, 0
  %v376 = vsel %vm20, %v321, 0
  %v379 = vsel %vm20, %v322, 0
  %v382 = vsel %vm20, %v323, 0
  %v385 = vsel %vm20, %v324, 0
  %v388 = vsel %vm20, %v325, 0
  %v391 = vsel %vm20, %v326, 0
  %v394 = vsel %vm20, %v327, 0
  %v397 = vsel %vm20, %v328, 0
  %v400 = vsel %vm20, %v329, 0
  %v403 = vsel %vm20, %v330, 0
  %v406 = vsel %vm20, %v331, 0
  %v409 = vsel %vm20, %v332, 0
  %v412 = vsel %vm20, %v333, 0
  %v415 = vsel %vm20, %v334, 0
  %v418 = vsel %vm20, %v335, 0
  %v421 = vsel %vm20, %v336, 0
  %v424 = vsel %vm20, %v337, 0
  %v427 = vsel %vm20, %v338, 0
  %v430 = vsel %vm20, %v339, 0
  %v433 = vsel %vm20, %v340, 0
  %v436 = vsel %vm20, %v341, 0
  %v439 = vsel %vm20, %v342, 0
  %441 = vmatpush.msra.mxu0 0.0
  %442 = vmatpush.msra.mxu0 0.0
  %443 = vmatpush.msra.mxu0 0.0
  %444 = vmatpush.msra.mxu0 0.0
  %445 = vmatpush.msra.mxu0 0.0
  %446 = vmatpush.msra.mxu0 0.0
  %447 = vmatpush.msra.mxu0 0.0
  %448 = vmatpush.msra.mxu0 0.0
  %449 = vmatpush.msra.mxu0 0.0
  %450 = vmatpush.msra.mxu0 0.0
  %451 = vmatpush.msra.mxu0 0.0
  %452 = vmatpush.msra.mxu0 0.0
  %453 = vmatpush.msra.mxu0 0.0
  %454 = vmatpush.msra.mxu0 0.0
  %455 = vmatpush.msra.mxu0 %v344
  %456 = vmatpush.msra.mxu0 %v343
  %457 = vmatmul.f32.gmra.mxu0 %v346
  %v458 = vpop.f32.mrf.mxu0
  %v459 = vadd.f32 0.0, %v458
  %460 = vmatmul.f32.gmra.mxu0 %v349
  %v461 = vpop.f32.mrf.mxu0
  %v462 = vadd.f32 0.0, %v461
  %463 = vmatmul.f32.gmra.mxu0 %v352
  %v464 = vpop.f32.mrf.mxu0
  %v465 = vadd.f32 0.0, %v464
  %466 = vmatmul.f32.gmra.mxu0 %v355
  %v467 = vpop.f32.mrf.mxu0
  %v468 = vadd.f32 0.0, %v467
  %469 = vmatmul.f32.gmra.mxu0 %v358
  %v470 = vpop.f32.mrf.mxu0
  %v471 = vadd.f32 0.0, %v470
  %472 = vmatmul.f32.gmra.mxu0 %v361
  %v473 = vpop.f32.mrf.mxu0
  %v474 = vadd.f32 0.0, %v473
  %475 = vmatmul.f32.gmra.mxu0 %v364
  %v476 = vpop.f32.mrf.mxu0
  %v477 = vadd.f32 0.0, %v476
  %478 = vmatmul.f32.gmra.mxu0 %v367
  %v479 = vpop.f32.mrf.mxu0
  %v480 = vadd.f32 0.0, %v479
  %481 = vmatmul.f32.gmra.mxu0 %v370
  %v482 = vpop.f32.mrf.mxu0
  %v483 = vadd.f32 0.0, %v482
  %484 = vmatmul.f32.gmra.mxu0 %v373
  %v485 = vpop.f32.mrf.mxu0
  %v486 = vadd.f32 0.0, %v485
  %487 = vmatmul.f32.gmra.mxu0 %v376
  %v488 = vpop.f32.mrf.mxu0
  %v489 = vadd.f32 0.0, %v488
  %490 = vmatmul.f32.gmra.mxu0 %v379
  %v491 = vpop.f32.mrf.mxu0
  %v492 = vadd.f32 0.0, %v491
  %493 = vmatmul.f32.gmra.mxu0 %v382
  %v494 = vpop.f32.mrf.mxu0
  %v495 = vadd.f32 0.0, %v494
  %496 = vmatmul.f32.gmra.mxu0 %v385
  %v497 = vpop.f32.mrf.mxu0
  %v498 = vadd.f32 0.0, %v497
  %499 = vmatmul.f32.gmra.mxu0 %v388
  %v500 = vpop.f32.mrf.mxu0
  %v501 = vadd.f32 0.0, %v500
  %502 = vmatmul.f32.gmra.mxu0 %v391
  %v503 = vpop.f32.mrf.mxu0
  %v504 = vadd.f32 0.0, %v503
  %505 = vmatmul.f32.gmra.mxu0 %v394
  %v506 = vpop.f32.mrf.mxu0
  %v507 = vadd.f32 0.0, %v506
  %508 = vmatmul.f32.gmra.mxu0 %v397
  %v509 = vpop.f32.mrf.mxu0
  %v510 = vadd.f32 0.0, %v509
  %511 = vmatmul.f32.gmra.mxu0 %v400
  %v512 = vpop.f32.mrf.mxu0
  %v513 = vadd.f32 0.0, %v512
  %514 = vmatmul.f32.gmra.mxu0 %v403
  %v515 = vpop.f32.mrf.mxu0
  %v516 = vadd.f32 0.0, %v515
  %517 = vmatmul.f32.gmra.mxu0 %v406
  %v518 = vpop.f32.mrf.mxu0
  %v519 = vadd.f32 0.0, %v518
  %520 = vmatmul.f32.gmra.mxu0 %v409
  %v521 = vpop.f32.mrf.mxu0
  %v522 = vadd.f32 0.0, %v521
  %523 = vmatmul.f32.gmra.mxu0 %v412
  %v524 = vpop.f32.mrf.mxu0
  %v525 = vadd.f32 0.0, %v524
  %526 = vmatmul.f32.gmra.mxu0 %v415
  %v527 = vpop.f32.mrf.mxu0
  %v528 = vadd.f32 0.0, %v527
  %529 = vmatmul.f32.gmra.mxu0 %v418
  %v530 = vpop.f32.mrf.mxu0
  %v531 = vadd.f32 0.0, %v530
  %532 = vmatmul.f32.gmra.mxu0 %v421
  %v533 = vpop.f32.mrf.mxu0
  %v534 = vadd.f32 0.0, %v533
  %535 = vmatmul.f32.gmra.mxu0 %v424
  %v536 = vpop.f32.mrf.mxu0
  %v537 = vadd.f32 0.0, %v536
  %538 = vmatmul.f32.gmra.mxu0 %v427
  %v539 = vpop.f32.mrf.mxu0
  %v540 = vadd.f32 0.0, %v539
  %541 = vmatmul.f32.gmra.mxu0 %v430
  %v542 = vpop.f32.mrf.mxu0
  %v543 = vadd.f32 0.0, %v542
  %544 = vmatmul.f32.gmra.mxu0 %v433
  %v545 = vpop.f32.mrf.mxu0
  %v546 = vadd.f32 0.0, %v545
  %547 = vmatmul.f32.gmra.mxu0 %v436
  %v548 = vpop.f32.mrf.mxu0
  %v549 = vadd.f32 0.0, %v548
  %550 = vmatmul.f32.gmra.mxu0 %v439
  %v551 = vpop.f32.mrf.mxu0
  %v552 = vadd.f32 0.0, %v551
  %553 = vdwg.mxu0
  %vm554 = vcmask 261120
  %555 = vst.msk [vmem:[%s3] sm:$0xff] %vm554, %v459
  %556 = vst.msk [vmem:[%s3 + $0x8] sm:$0xff] %vm554, %v462
  %557 = vst.msk [vmem:[%s3 + $0x10] sm:$0xff] %vm554, %v465
  %558 = vst.msk [vmem:[%s3 + $0x18] sm:$0xff] %vm554, %v468
  %559 = vst.msk [vmem:[%s3 + $0x20] sm:$0xff] %vm554, %v471
  %560 = vst.msk [vmem:[%s3 + $0x28] sm:$0xff] %vm554, %v474
  %561 = vst.msk [vmem:[%s3 + $0x30] sm:$0xff] %vm554, %v477
  %562 = vst.msk [vmem:[%s3 + $0x38] sm:$0xff] %vm554, %v480
  %563 = vst.msk [vmem:[%s3 + $0x40] sm:$0xff] %vm554, %v483
  %564 = vst.msk [vmem:[%s3 + $0x48] sm:$0xff] %vm554, %v486
  %565 = vst.msk [vmem:[%s3 + $0x50] sm:$0xff] %vm554, %v489
  %566 = vst.msk [vmem:[%s3 + $0x58] sm:$0xff] %vm554, %v492
  %567 = vst.msk [vmem:[%s3 + $0x60] sm:$0xff] %vm554, %v495
  %568 = vst.msk [vmem:[%s3 + $0x68] sm:$0xff] %vm554, %v498
  %569 = vst.msk [vmem:[%s3 + $0x70] sm:$0xff] %vm554, %v501
  %570 = vst.msk [vmem:[%s3 + $0x78] sm:$0xff] %vm554, %v504
  %571 = vst.msk [vmem:[%s3 + $0x80] sm:$0xff] %vm554, %v507
  %572 = vst.msk [vmem:[%s3 + $0x88] sm:$0xff] %vm554, %v510
  %573 = vst.msk [vmem:[%s3 + $0x90] sm:$0xff] %vm554, %v513
  %574 = vst.msk [vmem:[%s3 + $0x98] sm:$0xff] %vm554, %v516
  %575 = vst.msk [vmem:[%s3 + $0xa0] sm:$0xff] %vm554, %v519
  %576 = vst.msk [vmem:[%s3 + $0xa8] sm:$0xff] %vm554, %v522
  %577 = vst.msk [vmem:[%s3 + $0xb0] sm:$0xff] %vm554, %v525
  %578 = vst.msk [vmem:[%s3 + $0xb8] sm:$0xff] %vm554, %v528
  %579 = vst.msk [vmem:[%s3 + $0xc0] sm:$0xff] %vm554, %v531
  %580 = vst.msk [vmem:[%s3 + $0xc8] sm:$0xff] %vm554, %v534
  %581 = vst.msk [vmem:[%s3 + $0xd0] sm:$0xff] %vm554, %v537
  %582 = vst.msk [vmem:[%s3 + $0xd8] sm:$0xff] %vm554, %v540
  %583 = vst.msk [vmem:[%s3 + $0xe0] sm:$0xff] %vm554, %v543
  %584 = vst.msk [vmem:[%s3 + $0xe8] sm:$0xff] %vm554, %v546
  %585 = vst.msk [vmem:[%s3 + $0xf0] sm:$0xff] %vm554, %v549
  %586 = vst.msk [vmem:[%s3 + $0xf8] sm:$0xff] %vm554, %v552
  // Predicated region
  $region14: #{tpu_custom_call.1} parent=0 // pred_check
    _
  $region15: #{tpu_custom_call.1} parent=0 // pred_check_branch
    %588 = sbr.rel (0) target = $region17
  $region16: #{tpu_custom_call.1} parent=0 // pred_region
    _
  $region17: #{tpu_custom_call.1} parent=0 // pred_fallthru
    _
  // Predicated region
  $region18: #{tpu_custom_call.1} parent=0 // pred_check
    _
  $region19: #{tpu_custom_call.1} parent=0 // pred_check_branch
    %590 = sbr.rel (0) target = $region21
  $region20: #{tpu_custom_call.1} parent=0 // pred_region
    _
  $region21: #{tpu_custom_call.1} parent=0 // pred_fallthru
    _

</llo_original>
